<compile_context>
chip_gen: v6e
topology: v6e:2x2x1
jax: 0.10.0
libtpu: 0.0.40
codegen_flags: <defaults>
</compile_context>

<pallas_src>
import functools

import jax
import jax.numpy as jnp
from jax.experimental import pallas as pl
from jax.experimental.pallas import tpu as pltpu


_LANE = 128
# Keep fused blocks (2x in + 2x out double-buffered) well under v7x's 64 MiB
# physical VMEM; larger shapes take the tiled path.
_FUSED_VMEM_BUDGET = 48 * 1024 * 1024


def _ceil_to(x, m):
    return (x + m - 1) // m * m


# --------------------------------------------------------------------------
# Fused single-pass path: one batch element per grid step, whole (C, HWp)
# block resident.  Roofline-optimal HBM traffic (read x once, write out once).
# --------------------------------------------------------------------------
def _se_fused_kernel(x_ref, ones_ref, w1_ref, w2_ref, o_ref, *, inv_hw):
    x = x_ref[0]                                                    # (C, HWp), native dtype
    # Global average pool on the MXU with f32 accumulation (no f32 copy of x).
    pooled = jnp.dot(x, ones_ref[...],
                     preferred_element_type=jnp.float32) * inv_hw   # (C, 1) f32
    # 1x1 conv C -> S (no bias), then SiLU.
    s = jnp.dot(w1_ref[...].astype(jnp.float32), pooled,
                preferred_element_type=jnp.float32)                 # (S, 1)
    s = s * jax.nn.sigmoid(s)
    # 1x1 conv S -> C (no bias).
    u = jnp.dot(w2_ref[...].astype(jnp.float32), s,
                preferred_element_type=jnp.float32)                 # (C, 1)
    gate = jax.nn.sigmoid(u).astype(x.dtype)                        # (C, 1)
    o_ref[0] = x * gate


def _se_fused(x_flat, w1, w2, hw):
    N, C, HWp = x_flat.shape
    S = w1.shape[0]
    dtype = x_flat.dtype
    ones = jnp.ones((HWp, 1), dtype=dtype)

    blk_bytes = C * HWp * dtype.itemsize
    vmem_limit = int(max(32 << 20, min(_FUSED_VMEM_BUDGET,
                                       4 * blk_bytes + (2 << 20))))

    return pl.pallas_call(
        functools.partial(_se_fused_kernel, inv_hw=1.0 / hw),
        out_shape=jax.ShapeDtypeStruct((N, C, HWp), dtype),
        grid_spec=pltpu.PrefetchScalarGridSpec(
            num_scalar_prefetch=0,
            grid=(N,),
            in_specs=[
                pl.BlockSpec((1, C, HWp), lambda n: (n, 0, 0)),
                pl.BlockSpec((HWp, 1), lambda n: (0, 0)),
                pl.BlockSpec((S, C), lambda n: (0, 0)),
                pl.BlockSpec((C, S), lambda n: (0, 0)),
            ],
            out_specs=pl.BlockSpec((1, C, HWp), lambda n: (n, 0, 0)),
        ),
        compiler_params=pltpu.CompilerParams(
            dimension_semantics=("parallel",),
            vmem_limit_bytes=vmem_limit,
        ),
    )(x_flat, ones, w1, w2)


# --------------------------------------------------------------------------
# Tiled three-pass path for large C*H*W blocks:
#   pass 1: per-channel spatial sums, accumulated over HW tiles (MXU dot)
#   pass 2: tiny batched gate matmuls (batched across N)
#   pass 3: gate-and-scale, fully parallel (N, n_hw) grid
# --------------------------------------------------------------------------
def _pool_kernel(x_ref, ones_ref, sum_ref):
    @pl.when(pl.program_id(1) == 0)
    def _():
        sum_ref[...] = jnp.zeros_like(sum_ref)

    # Per-channel spatial sum on the MXU, f32 accumulation, x in native dtype.
    sum_ref[0] += jnp.dot(x_ref[0], ones_ref[...],
                          preferred_element_type=jnp.float32)       # (C, 1)


def _gate_kernel(sum_ref, w1t_ref, w2t_ref, gate_ref, *, inv_hw):
    pooled = sum_ref[...][:, :, 0] * inv_hw                         # (N, C) f32
    # Batched across N: one (N,C)@(C,S) and one (N,S)@(S,C) matmul instead of
    # N separate matvecs.
    s = jnp.dot(pooled, w1t_ref[...],
                preferred_element_type=jnp.float32)                 # (N, S)
    s = s * jax.nn.sigmoid(s)
    u = jnp.dot(s, w2t_ref[...],
                preferred_element_type=jnp.float32)                 # (N, C)
    gate_ref[...] = jax.nn.sigmoid(u)[:, :, None]                   # (N, C, 1)


def _apply_kernel(gate_ref, x_ref, o_ref):
    gate = gate_ref[0].astype(o_ref.dtype)                          # (C, 1)
    o_ref[0] = x_ref[0] * gate                                      # native dtype


def _se_tiled(x_flat, w1, w2, hw, hw_tile):
    N, C, HWp = x_flat.shape
    S = w1.shape[0]
    dtype = x_flat.dtype
    n_hw = HWp // hw_tile
    ones = jnp.ones((hw_tile, 1), dtype=dtype)

    tile_bytes = C * hw_tile * dtype.itemsize
    vmem_limit = int(max(32 << 20, min(_FUSED_VMEM_BUDGET,
                                       4 * tile_bytes + (2 << 20))))

    # --- pass 1: per-channel sums, accumulated across the HW-tile axis ------
    pooled_sum = pl.pallas_call(
        _pool_kernel,
        out_shape=jax.ShapeDtypeStruct((N, C, 1), jnp.float32),
        grid_spec=pltpu.PrefetchScalarGridSpec(
            num_scalar_prefetch=0,
            grid=(N, n_hw),
            in_specs=[
                pl.BlockSpec((1, C, hw_tile), lambda n, h: (n, 0, h)),
                pl.BlockSpec((hw_tile, 1), lambda n, h: (0, 0)),
            ],
            out_specs=pl.BlockSpec((1, C, 1), lambda n, h: (n, 0, 0)),
        ),
        compiler_params=pltpu.CompilerParams(
            dimension_semantics=("parallel", "arbitrary"),
            vmem_limit_bytes=vmem_limit,
        ),
    )(x_flat, ones)

    # --- pass 2: tiny batched gate computation (single call, all in VMEM) ---
    w1t = jnp.transpose(w1).astype(jnp.float32)                     # (C, S)
    w2t = jnp.transpose(w2).astype(jnp.float32)                     # (S, C)
    gates = pl.pallas_call(
        functools.partial(_gate_kernel, inv_hw=1.0 / hw),
        out_shape=jax.ShapeDtypeStruct((N, C, 1), jnp.float32),
    )(pooled_sum, w1t, w2t)

    # --- pass 3: gate and scale; every (n, hw) tile is independent ----------
    out = pl.pallas_call(
        _apply_kernel,
        out_shape=jax.ShapeDtypeStruct((N, C, HWp), dtype),
        grid_spec=pltpu.PrefetchScalarGridSpec(
            num_scalar_prefetch=0,
            grid=(N, n_hw),
            in_specs=[
                pl.BlockSpec((1, C, 1), lambda n, h: (n, 0, 0)),
                pl.BlockSpec((1, C, hw_tile), lambda n, h: (n, 0, h)),
            ],
            out_specs=pl.BlockSpec((1, C, hw_tile), lambda n, h: (n, 0, h)),
        ),
        compiler_params=pltpu.CompilerParams(
            dimension_semantics=("parallel", "parallel"),
            vmem_limit_bytes=vmem_limit,
        ),
    )(gates, x_flat)
    return out


# --------------------------------------------------------------------------
# Wrapper
# --------------------------------------------------------------------------
def squeeze_excitation(x_nchw, w_squeeze, w_unsqueeze, *, hw_tile=1024,
                       force_tiled=False):
    """SE forward.  x_nchw: (N,C,H,W); w_squeeze: (S,C) or (S,C,1,1);
    w_unsqueeze: (C,S) or (C,S,1,1)."""
    N, C, H, W = x_nchw.shape
    # PyTorch stores 1x1-conv weights as (out, in, 1, 1) — squeeze them here.
    if w_squeeze.ndim == 4:
        w_squeeze = w_squeeze.reshape(w_squeeze.shape[0], w_squeeze.shape[1])
    if w_unsqueeze.ndim == 4:
        w_unsqueeze = w_unsqueeze.reshape(w_unsqueeze.shape[0],
                                          w_unsqueeze.shape[1])
    S = w_squeeze.shape[0]
    assert w_squeeze.shape == (S, C) and w_unsqueeze.shape == (C, S)

    HW = H * W
    hw_tile = max(_LANE, (int(hw_tile) // _LANE) * _LANE)

    x_flat = x_nchw.reshape(N, C, HW)
    fused_blk = C * _ceil_to(HW, _LANE) * x_nchw.dtype.itemsize
    use_fused = (not force_tiled) and (4 * fused_blk + (2 << 20)
                                       <= _FUSED_VMEM_BUDGET)

    if use_fused:
        HWp = _ceil_to(HW, _LANE)                       # lane-dense last dim
        if HWp != HW:
            x_flat = jnp.pad(x_flat, ((0, 0), (0, 0), (0, HWp - HW)))
        out_flat = _se_fused(x_flat, w_squeeze, w_unsqueeze, HW)
    else:
        hw_tile = min(hw_tile, _ceil_to(HW, _LANE))
        HWp = _ceil_to(HW, hw_tile)                     # lane-dense + tileable
        if HWp != HW:
            x_flat = jnp.pad(x_flat, ((0, 0), (0, 0), (0, HWp - HW)))
        out_flat = _se_tiled(x_flat, w_squeeze, w_unsqueeze, HW, hw_tile)

    if HWp != HW:
        out_flat = out_flat[:, :, :HW]
    return out_flat.reshape(N, C, H, W)


# --------------------------------------------------------------------------
# Pure-JAX reference
# --------------------------------------------------------------------------
def _reference(x, w1, w2):
    pooled = jnp.mean(x, axis=(2, 3), keepdims=True)                # (N,C,1,1)
    s = jnp.einsum("sc,ncij->nsij", w1, pooled)                     # (N,S,1,1)
    s = s * jax.nn.sigmoid(s)
    u = jnp.einsum("cs,nsij->ncij", w2, s)                          # (N,C,1,1)
    return x * jax.nn.sigmoid(u)


if __name__ == "__main__":
    # Small shapes: batch=2, in_channels=4, squeeze_channels=2, spatial=16x16.
    N, C, S, H, W = 2, 4, 2, 16, 16

    key = jax.random.PRNGKey(0)
    kx, k1, k2 = jax.random.split(key, 3)
    x = jax.random.normal(kx, (N, C, H, W), dtype=jnp.float32)
    # 1x1 conv weights (no bias) stored as 2-D matrices (kaiming-ish scale).
    w_squeeze = jax.random.normal(k1, (S, C), dtype=jnp.float32) * (1.0 / C) ** 0.5
    w_unsqueeze = jax.random.normal(k2, (C, S), dtype=jnp.float32) * (1.0 / S) ** 0.5

    ref = _reference(x, w_squeeze, w_unsqueeze)

    # Default (fused single-pass) path.
    out_fused = jax.block_until_ready(
        squeeze_excitation(x, w_squeeze, w_unsqueeze))
    assert out_fused.shape == (N, C, H, W)
    assert jnp.allclose(out_fused, ref, atol=1e-5, rtol=1e-5)

    # Spatially tiled three-pass path (what large C*H*W shapes take, e.g. v7x).
    out_tiled = jax.block_until_ready(
        squeeze_excitation(x, w_squeeze, w_unsqueeze,
                           hw_tile=128, force_tiled=True))
    assert out_tiled.shape == (N, C, H, W)
    assert jnp.allclose(out_tiled, ref, atol=1e-5, rtol=1e-5)

    print("KERNEL_OK")
</pallas_src>

<mosaic_0001>
module attributes {stable_mosaic.version = 11 : i64} {
  func.func @_se_fused_kernel(%arg0: i32, %arg1: memref<1x4x256xf32, #tpu.memory_space<vmem>>, %arg2: memref<256x1xf32, #tpu.memory_space<vmem>>, %arg3: memref<2x4xf32, #tpu.memory_space<vmem>>, %arg4: memref<4x2xf32, #tpu.memory_space<vmem>>, %arg5: memref<1x4x256xf32, #tpu.memory_space<vmem>>) attributes {dimension_semantics = [#tpu.dimension_semantics<parallel>], iteration_bounds = array<i64: 2>, scalar_prefetch = 0 : i64, scratch_operands = 0 : i64, tpu.core_type = #tpu.core_type<tc>, window_params = [{transform_indices = @transform_0, window_bounds = array<i64: 1, 4, 256>}, {pipeline_mode = #tpu.pipeline_mode<synchronous>, transform_indices = @transform_1, window_bounds = array<i64: 256, 1>}, {pipeline_mode = #tpu.pipeline_mode<synchronous>, transform_indices = @transform_2, window_bounds = array<i64: 2, 4>}, {pipeline_mode = #tpu.pipeline_mode<synchronous>, transform_indices = @transform_3, window_bounds = array<i64: 4, 2>}, {transform_indices = @transform_4, window_bounds = array<i64: 1, 4, 256>}]} {
    %c0 = arith.constant 0 : index
    %c0_0 = arith.constant 0 : index
    %c0_1 = arith.constant 0 : index
    %0 = vector.load %arg1[%c0, %c0_0, %c0_1] : memref<1x4x256xf32, #tpu.memory_space<vmem>>, vector<1x4x256xf32>
    %1 = vector.shape_cast %0 : vector<1x4x256xf32> to vector<4x256xf32>
    %c0_2 = arith.constant 0 : index
    %c0_3 = arith.constant 0 : index
    %2 = vector.load %arg2[%c0_2, %c0_3] : memref<256x1xf32, #tpu.memory_space<vmem>>, vector<256x1xf32>
    %cst = arith.constant dense<0.000000e+00> : vector<4x1xf32>
    %3 = tpu.matmul %1, %2, %cst {dimension_numbers = #tpu.dot_dimension_numbers<[1], [0], [0], [1], [0, 0, 1, 1], [], []>} : vector<4x256xf32>, vector<256x1xf32>, vector<4x1xf32> -> vector<4x1xf32>
    %cst_4 = arith.constant 3.906250e-03 : f32
    %4 = vector.broadcast %cst_4 : f32 to vector<4x1xf32>
    %5 = arith.mulf %3, %4 : vector<4x1xf32>
    %c0_5 = arith.constant 0 : index
    %c0_6 = arith.constant 0 : index
    %6 = vector.load %arg3[%c0_5, %c0_6] : memref<2x4xf32, #tpu.memory_space<vmem>>, vector<2x4xf32>
    %cst_7 = arith.constant dense<0.000000e+00> : vector<2x1xf32>
    %7 = tpu.matmul %6, %5, %cst_7 {dimension_numbers = #tpu.dot_dimension_numbers<[1], [0], [0], [1], [0, 0, 1, 1], [], []>} : vector<2x4xf32>, vector<4x1xf32>, vector<2x1xf32> -> vector<2x1xf32>
    %8 = arith.negf %7 : vector<2x1xf32>
    %9 = math.exp %8 : vector<2x1xf32>
    %cst_8 = arith.constant 1.000000e+00 : f32
    %10 = vector.broadcast %cst_8 : f32 to vector<2x1xf32>
    %11 = arith.addf %10, %9 : vector<2x1xf32>
    %12 = arith.divf %10, %11 : vector<2x1xf32>
    %13 = arith.mulf %7, %12 : vector<2x1xf32>
    %c0_9 = arith.constant 0 : index
    %c0_10 = arith.constant 0 : index
    %14 = vector.load %arg4[%c0_9, %c0_10] : memref<4x2xf32, #tpu.memory_space<vmem>>, vector<4x2xf32>
    %cst_11 = arith.constant dense<0.000000e+00> : vector<4x1xf32>
    %15 = tpu.matmul %14, %13, %cst_11 {dimension_numbers = #tpu.dot_dimension_numbers<[1], [0], [0], [1], [0, 0, 1, 1], [], []>} : vector<4x2xf32>, vector<2x1xf32>, vector<4x1xf32> -> vector<4x1xf32>
    %16 = arith.negf %15 : vector<4x1xf32>
    %17 = math.exp %16 : vector<4x1xf32>
    %cst_12 = arith.constant 1.000000e+00 : f32
    %18 = vector.broadcast %cst_12 : f32 to vector<4x1xf32>
    %19 = arith.addf %18, %17 : vector<4x1xf32>
    %20 = arith.divf %18, %19 : vector<4x1xf32>
    %21 = vector.broadcast %20 : vector<4x1xf32> to vector<4x256xf32>
    %22 = arith.mulf %1, %21 : vector<4x256xf32>
    %c0_13 = arith.constant 0 : index
    %c0_14 = arith.constant 0 : index
    %c0_15 = arith.constant 0 : index
    %23 = vector.load %arg5[%c0_13, %c0_14, %c0_15] : memref<1x4x256xf32, #tpu.memory_space<vmem>>, vector<1x4x256xf32>
    %24 = vector.shape_cast %23 : vector<1x4x256xf32> to vector<4x256xf32>
    %25 = vector.shape_cast %22 : vector<4x256xf32> to vector<1x4x256xf32>
    tpu.vector_store %arg5[%c0_13, %c0_14, %c0_15], %25 {strides = array<i32>} : memref<1x4x256xf32, #tpu.memory_space<vmem>>, vector<1x4x256xf32>,
    return
  }
  func.func @transform_0(%arg0: i32) -> (i32, i32, i32) {
    %c0_i32 = arith.constant 0 : i32
    %c0_i32_0 = arith.constant 0 : i32
    %c0_i32_1 = arith.constant 0 : i32
    return %arg0, %c0_i32, %c0_i32_0 : i32, i32, i32
  }
  func.func @transform_1(%arg0: i32) -> (i32, i32) {
    %c0_i32 = arith.constant 0 : i32
    %c0_i32_0 = arith.constant 0 : i32
    %c0_i32_1 = arith.constant 0 : i32
    return %c0_i32, %c0_i32_0 : i32, i32
  }
  func.func @transform_2(%arg0: i32) -> (i32, i32) {
    %c0_i32 = arith.constant 0 : i32
    %c0_i32_0 = arith.constant 0 : i32
    %c0_i32_1 = arith.constant 0 : i32
    return %c0_i32, %c0_i32_0 : i32, i32
  }
  func.func @transform_3(%arg0: i32) -> (i32, i32) {
    %c0_i32 = arith.constant 0 : i32
    %c0_i32_0 = arith.constant 0 : i32
    %c0_i32_1 = arith.constant 0 : i32
    return %c0_i32, %c0_i32_0 : i32, i32
  }
  func.func @transform_4(%arg0: i32) -> (i32, i32, i32) {
    %c0_i32 = arith.constant 0 : i32
    %c0_i32_0 = arith.constant 0 : i32
    %c0_i32_1 = arith.constant 0 : i32
    return %arg0, %c0_i32, %c0_i32_0 : i32, i32, i32
  }
}

</mosaic_0001>

<llo_original>
// kernel: tpu_custom_call.1
$region0: #{tpu_custom_call.1}
  #allocation0 [shape = 'u32[]', space=smem, size = 0x4, offset = 0x4, fixed_abs, tag = 'smem constant byte address 0x4 - core index']
  #allocation1 [shape = 'u32[144,128]{1,0:T(1,128)}', space=vmem, size = 0x12000, scoped, tag = 'internal scratch']
  %s0 = inlined_call_operand.vmem [shape: f32[2,4,256], index: 0, kind: input, shape index: {}]
  %s1 = inlined_call_operand.vmem [shape: f32[256,1], index: 1, kind: input, shape index: {}]
  %s2 = inlined_call_operand.vmem [shape: f32[2,4], index: 2, kind: input, shape index: {}]
  %s3 = inlined_call_operand.vmem [shape: f32[4,2], index: 3, kind: input, shape index: {}]
  %s4 = inlined_call_operand.hbm [shape: f32[2,4,256], index: 4, kind: output, shape index: {}]
  %s5 = sld [smem:[#allocation0]]
  $region49: #{tpu_custom_call.1} parent=0
    _
  %s7 = ssub.s32 1, %s5
  %s8 = scalar_select 0, %s7, %s5
  $region1: #{tpu_custom_call.1} parent=0
    #allocation2 [shape = 'u8[8192]{0}', space=vmem, size = 0x2000, scoped, tag = 'output window, operand 0']
    #allocation3 [shape = 's32[2]{0}', space=sflag, size = 0x8, scoped, tag = 'scoped memory for tpu_custom_call.1']
    %9 = vsyncpa [#allocation3], 0
    %s10 = scalar_lea.sflag [#allocation3], 1
    %11 = vsyncpa %s10, 0
    loop: start=0, step=1, limit=4
    $region2: #{tpu_custom_call.1} parent=1 // loop_pre_header
      _
    $region3: #{tpu_custom_call.1} parent=1 // loop_header
      %s13 = sphi 0, %s17
      %p14 = scmp.ge.s32.totalorder %s13, 4
      %s23 = sphi 0, %s25
      %s26 = sphi 0, %s23
      %s27 = sphi 0, %s26
      %s43 = sphi 0, %s27
      %s47 = sphi 0, %s47
      %s49 = sphi 0, %s47
      %s50 = sphi 0, %s49
      %s64 = sphi 0, %s50
      %s68 = sphi 0, %s68
      %s70 = sphi 0, %s68
      %s71 = sphi 0, %s70
      %s85 = sphi 0, %s71
      %s89 = sphi 0, %s89
      %s91 = sphi 0, %s89
      %s92 = sphi 0, %s91
      %s106 = sphi 0, %s92
      %s112 = sphi 0, %s114
      %s115 = sphi 0, %s112
      %s116 = sphi 0, %s115
      %s132 = sphi 0, %s116
    $region4: #{tpu_custom_call.1} parent=1 // loop_header_branch
      %16 = sbr.rel (%p14) target = $region8
    $region5: #{tpu_custom_call.1} parent=1 // loop_body
      %s18 = ssub.s32 %s13, 1
      %s19 = ssub.s32 %s13, 2
      %s20 = sadd.s32 %s13, 1
      %s21 = ssub.s32 %s13, %s20
      %p22 = scmp.eq.s32.totalorder %s21, 0
      %s24 = sadd.s32 %s23, 1
      %s25 = scalar_select %p22, %s23, %s24
      %p28 = pneg %p22
      %p29 = scmp.eq.s32.totalorder %s13, 1
      %p30 = por %p28, %p29
      %p31 = scmp.ne.s32.totalorder %s23, %s26
      %p32 = scmp.eq.s32.totalorder %s13, 0
      %p33 = por %p31, %p32
      %p34 = scmp.ne.s32.totalorder %s23, %s26
      %p35 = scmp.eq.s32.totalorder %s18, 1
      %p36 = por %p34, %p35
      %p37 = scmp.ne.s32.totalorder %s26, %s27
      %p38 = scmp.eq.s32.totalorder %s18, 0
      %p39 = por %p37, %p38
      %p40 = scmp.ne.s32.totalorder %s26, %s27
      %p41 = scmp.eq.s32.totalorder %s19, 1
      %p42 = por %p40, %p41
      %p44 = scmp.ne.s32.totalorder %s27, %s43
      %p45 = scmp.eq.s32.totalorder %s19, 0
      %p46 = por %p44, %p45
      %s48 = sadd.s32 %s47, 1
      %p51 = scmp.eq.s32.totalorder %s13, 1
      %p52 = scmp.ne.s32.totalorder %s47, %s49
      %p53 = scmp.eq.s32.totalorder %s13, 0
      %p54 = por %p52, %p53
      %p55 = scmp.ne.s32.totalorder %s47, %s49
      %p56 = scmp.eq.s32.totalorder %s18, 1
      %p57 = por %p55, %p56
      %p58 = scmp.ne.s32.totalorder %s49, %s50
      %p59 = scmp.eq.s32.totalorder %s18, 0
      %p60 = por %p58, %p59
      %p61 = scmp.ne.s32.totalorder %s49, %s50
      %p62 = scmp.eq.s32.totalorder %s19, 1
      %p63 = por %p61, %p62
      %p65 = scmp.ne.s32.totalorder %s50, %s64
      %p66 = scmp.eq.s32.totalorder %s19, 0
      %p67 = por %p65, %p66
      %s69 = sadd.s32 %s68, 1
      %p72 = scmp.eq.s32.totalorder %s13, 1
      %p73 = scmp.ne.s32.totalorder %s68, %s70
      %p74 = scmp.eq.s32.totalorder %s13, 0
      %p75 = por %p73, %p74
      %p76 = scmp.ne.s32.totalorder %s68, %s70
      %p77 = scmp.eq.s32.totalorder %s18, 1
      %p78 = por %p76, %p77
      %p79 = scmp.ne.s32.totalorder %s70, %s71
      %p80 = scmp.eq.s32.totalorder %s18, 0
      %p81 = por %p79, %p80
      %p82 = scmp.ne.s32.totalorder %s70, %s71
      %p83 = scmp.eq.s32.totalorder %s19, 1
      %p84 = por %p82, %p83
      %p86 = scmp.ne.s32.totalorder %s71, %s85
      %p87 = scmp.eq.s32.totalorder %s19, 0
      %p88 = por %p86, %p87
      %s90 = sadd.s32 %s89, 1
      %p93 = scmp.eq.s32.totalorder %s13, 1
      %p94 = scmp.ne.s32.totalorder %s89, %s91
      %p95 = scmp.eq.s32.totalorder %s13, 0
      %p96 = por %p94, %p95
      %p97 = scmp.ne.s32.totalorder %s89, %s91
      %p98 = scmp.eq.s32.totalorder %s18, 1
      %p99 = por %p97, %p98
      %p100 = scmp.ne.s32.totalorder %s91, %s92
      %p101 = scmp.eq.s32.totalorder %s18, 0
      %p102 = por %p100, %p101
      %p103 = scmp.ne.s32.totalorder %s91, %s92
      %p104 = scmp.eq.s32.totalorder %s19, 1
      %p105 = por %p103, %p104
      %p107 = scmp.ne.s32.totalorder %s92, %s106
      %p108 = scmp.eq.s32.totalorder %s19, 0
      %p109 = por %p107, %p108
      %s110 = ssub.s32 %s13, %s20
      %p111 = scmp.eq.s32.totalorder %s110, 0
      %s113 = sadd.s32 %s112, 1
      %s114 = scalar_select %p111, %s112, %s113
      %p117 = pneg %p111
      %p118 = scmp.eq.s32.totalorder %s13, 1
      %p119 = por %p117, %p118
      %p120 = scmp.ne.s32.totalorder %s112, %s115
      %p121 = scmp.eq.s32.totalorder %s13, 0
      %p122 = por %p120, %p121
      %p123 = scmp.ne.s32.totalorder %s112, %s115
      %p124 = scmp.eq.s32.totalorder %s18, 1
      %p125 = por %p123, %p124
      %p126 = scmp.ne.s32.totalorder %s115, %s116
      %p127 = scmp.eq.s32.totalorder %s18, 0
      %p128 = por %p126, %p127
      %p129 = scmp.ne.s32.totalorder %s115, %s116
      %p130 = scmp.eq.s32.totalorder %s19, 1
      %p131 = por %p129, %p130
      %p133 = scmp.ne.s32.totalorder %s116, %s132
      %p134 = scmp.eq.s32.totalorder %s19, 0
      %p135 = por %p133, %p134
      %p136 = scmp.le.s32.totalorder 1, %s13
      %p137 = scmp.lt.s32.totalorder %s13, 3
      %p138 = pnand %p136, %p137
      %p139 = pneg %p138
      // Predicated region
      $region9: #{tpu_custom_call.1} parent=5 // pred_check
        _
      $region10: #{tpu_custom_call.1} parent=5 // pred_check_branch
        %141 = sbr.rel (%p138) target = $region12
      $region11: #{tpu_custom_call.1} parent=5 // pred_region
        %s142 = ssub.s32 %s13, 1
        // Predicated region
        $region13: #{tpu_custom_call.1} parent=11 // pred_check
          %p143 = pneg %p60
        $region14: #{tpu_custom_call.1} parent=11 // pred_check_branch
          %145 = sbr.rel (%p143) target = $region16
        $region15: #{tpu_custom_call.1} parent=11 // pred_region
          _
        $region16: #{tpu_custom_call.1} parent=11 // pred_fallthru
          _
        // Predicated region
        $region17: #{tpu_custom_call.1} parent=11 // pred_check
          %p146 = pneg %p81
        $region18: #{tpu_custom_call.1} parent=11 // pred_check_branch
          %148 = sbr.rel (%p146) target = $region20
        $region19: #{tpu_custom_call.1} parent=11 // pred_region
          _
        $region20: #{tpu_custom_call.1} parent=11 // pred_fallthru
          _
        // Predicated region
        $region21: #{tpu_custom_call.1} parent=11 // pred_check
          %p149 = pneg %p102
        $region22: #{tpu_custom_call.1} parent=11 // pred_check_branch
          %151 = sbr.rel (%p149) target = $region24
        $region23: #{tpu_custom_call.1} parent=11 // pred_region
          _
        $region24: #{tpu_custom_call.1} parent=11 // pred_fallthru
          _
      $region12: #{tpu_custom_call.1} parent=5 // pred_fallthru
        _
      %p152 = scmp.lt.s32.totalorder %s13, 2
      // Predicated region
      $region25: #{tpu_custom_call.1} parent=5 // pred_check
        %p153 = pneg %p152
      $region26: #{tpu_custom_call.1} parent=5 // pred_check_branch
        %155 = sbr.rel (%p153) target = $region28
      $region27: #{tpu_custom_call.1} parent=5 // pred_region
        // Predicated region
        $region29: #{tpu_custom_call.1} parent=27 // pred_check
          %p156 = pneg %p33
        $region30: #{tpu_custom_call.1} parent=27 // pred_check_branch
          %158 = sbr.rel (%p156) target = $region32
        $region31: #{tpu_custom_call.1} parent=27 // pred_region
          %p159 = scmp.lt.s32.totalorder %s13, 1
          %s160 = scalar_select %p159, %s13, 1
          %s161 = smul.addr %s160, 2
          %s162 = smul.addr %s161, 4
          %s163 = scalar_lea.vmem %s0, %s162
        $region32: #{tpu_custom_call.1} parent=27 // pred_fallthru
          _
      $region28: #{tpu_custom_call.1} parent=5 // pred_fallthru
        _
      %p164 = scmp.le.s32.totalorder 1, %s13
      %p165 = scmp.lt.s32.totalorder %s13, 3
      %p166 = pnand %p164, %p165
      %p167 = pneg %p166
      // Predicated region
      $region33: #{tpu_custom_call.1} parent=5 // pred_check
        _
      $region34: #{tpu_custom_call.1} parent=5 // pred_check_branch
        %169 = sbr.rel (%p166) target = $region36
      $region35: #{tpu_custom_call.1} parent=5 // pred_region
        %s170 = ssub.s32 %s13, 1
        %p171 = scmp.lt.s32.totalorder %s18, 1
        %s172 = scalar_select %p171, %s18, 1
        %s173 = smul.addr %s172, 2
        %s174 = smul.addr %s173, 4
        %s175 = scalar_lea.vmem %s0, %s174
        %p176 = pneg %p39
        %p177 = pneg %p36
        %p178 = pneg %p60
        %p179 = pneg %p57
        %p180 = pneg %p81
        %p181 = pneg %p78
        %p182 = pneg %p102
        %p183 = pneg %p99
        %p184 = pneg %p128
        %p185 = pneg %p125
        %s186 = sand.u32 %s115, 1
        %s187 = scalar_lea.sflag [#allocation3], %s186
        %s188 = sand.u32 %s115, 1
        %s189 = smul.addr %s188, 8
        %s190 = scalar_lea.vmem [#allocation2], %s189
        %p191 = scmp.lt.s32.totalorder %s18, 1
        %s192 = scalar_select %p191, %s18, 1
        %s193 = smul.addr %s192, 2
        %s194 = smul.addr %s193, 4
        %s195 = scalar_lea.vmem %s0, %s194
        %v196 = vld [vmem:[%s195] sm:$0xff]
        %v197 = vld [vmem:[%s1] sm:$0xff]
        %v198 = vld [vmem:[%s1 + $0x8] sm:$0xff]
        %v199 = vld [vmem:[%s1 + $0x10] sm:$0xff]
        %v200 = vld [vmem:[%s1 + $0x18] sm:$0xff]
        %v201 = vld [vmem:[%s1 + $0x20] sm:$0xff]
        %v202 = vld [vmem:[%s1 + $0x28] sm:$0xff]
        %v203 = vld [vmem:[%s1 + $0x30] sm:$0xff]
        %v204 = vld [vmem:[%s1 + $0x38] sm:$0xff]
        %v205 = vld [vmem:[%s1 + $0x40] sm:$0xff]
        %v206 = vld [vmem:[%s1 + $0x48] sm:$0xff]
        %v207 = vld [vmem:[%s1 + $0x50] sm:$0xff]
        %v208 = vld [vmem:[%s1 + $0x58] sm:$0xff]
        %v209 = vld [vmem:[%s1 + $0x60] sm:$0xff]
        %v210 = vld [vmem:[%s1 + $0x68] sm:$0xff]
        %v211 = vld [vmem:[%s1 + $0x70] sm:$0xff]
        %v212 = vld [vmem:[%s1 + $0x78] sm:$0xff]
        %v213 = vld [vmem:[%s1 + $0x80] sm:$0xff]
        %v214 = vld [vmem:[%s1 + $0x88] sm:$0xff]
        %v215 = vld [vmem:[%s1 + $0x90] sm:$0xff]
        %v216 = vld [vmem:[%s1 + $0x98] sm:$0xff]
        %v217 = vld [vmem:[%s1 + $0xa0] sm:$0xff]
        %v218 = vld [vmem:[%s1 + $0xa8] sm:$0xff]
        %v219 = vld [vmem:[%s1 + $0xb0] sm:$0xff]
        %v220 = vld [vmem:[%s1 + $0xb8] sm:$0xff]
        %v221 = vld [vmem:[%s1 + $0xc0] sm:$0xff]
        %v222 = vld [vmem:[%s1 + $0xc8] sm:$0xff]
        %v223 = vld [vmem:[%s1 + $0xd0] sm:$0xff]
        %v224 = vld [vmem:[%s1 + $0xd8] sm:$0xff]
        %v225 = vld [vmem:[%s1 + $0xe0] sm:$0xff]
        %v226 = vld [vmem:[%s1 + $0xe8] sm:$0xff]
        %v227 = vld [vmem:[%s1 + $0xf0] sm:$0xff]
        %v228 = vld [vmem:[%s1 + $0xf8] sm:$0xff]
        %v230 = vcombine.high %v196, %v196
        %232 = vmatprep.subr.mxu0 0.0
        %233 = vmatpush1.msra.mxu0 %v212
        %234 = vmatprep.subr.mxu0 0.0
        %235 = vmatpush1.msra.mxu0 %v211
        %236 = vmatprep.subr.mxu0 0.0
        %237 = vmatpush1.msra.mxu0 %v210
        %238 = vmatprep.subr.mxu0 0.0
        %239 = vmatpush1.msra.mxu0 %v209
        %240 = vmatprep.subr.mxu0 0.0
        %241 = vmatpush1.msra.mxu0 %v208
        %242 = vmatprep.subr.mxu0 0.0
        %243 = vmatpush1.msra.mxu0 %v207
        %244 = vmatprep.subr.mxu0 0.0
        %245 = vmatpush1.msra.mxu0 %v206
        %246 = vmatprep.subr.mxu0 0.0
        %247 = vmatpush1.msra.mxu0 %v205
        %248 = vmatprep.subr.mxu0 0.0
        %249 = vmatpush1.msra.mxu0 %v204
        %250 = vmatprep.subr.mxu0 0.0
        %251 = vmatpush1.msra.mxu0 %v203
        %252 = vmatprep.subr.mxu0 0.0
        %253 = vmatpush1.msra.mxu0 %v202
        %254 = vmatprep.subr.mxu0 0.0
        %255 = vmatpush1.msra.mxu0 %v201
        %256 = vmatprep.subr.mxu0 0.0
        %257 = vmatpush1.msra.mxu0 %v200
        %258 = vmatprep.subr.mxu0 0.0
        %259 = vmatpush1.msra.mxu0 %v199
        %260 = vmatprep.subr.mxu0 0.0
        %261 = vmatpush1.msra.mxu0 %v198
        %262 = vmatprep.subr.mxu0 0.0
        %263 = vmatpush1.msra.mxu0 %v197
        %264 = vmatprep.subr.mxu0 0.0
        %265 = vmatpush2.msra.mxu0 %v228
        %266 = vmatprep.subr.mxu0 0.0
        %267 = vmatpush2.msra.mxu0 %v227
        %268 = vmatprep.subr.mxu0 0.0
        %269 = vmatpush2.msra.mxu0 %v226
        %270 = vmatprep.subr.mxu0 0.0
        %271 = vmatpush2.msra.mxu0 %v225
        %272 = vmatprep.subr.mxu0 0.0
        %273 = vmatpush2.msra.mxu0 %v224
        %274 = vmatprep.subr.mxu0 0.0
        %275 = vmatpush2.msra.mxu0 %v223
        %276 = vmatprep.subr.mxu0 0.0
        %277 = vmatpush2.msra.mxu0 %v222
        %278 = vmatprep.subr.mxu0 0.0
        %279 = vmatpush2.msra.mxu0 %v221
        %280 = vmatprep.subr.mxu0 0.0
        %281 = vmatpush2.msra.mxu0 %v220
        %282 = vmatprep.subr.mxu0 0.0
        %283 = vmatpush2.msra.mxu0 %v219
        %284 = vmatprep.subr.mxu0 0.0
        %285 = vmatpush2.msra.mxu0 %v218
        %286 = vmatprep.subr.mxu0 0.0
        %287 = vmatpush2.msra.mxu0 %v217
        %288 = vmatprep.subr.mxu0 0.0
        %289 = vmatpush2.msra.mxu0 %v216
        %290 = vmatprep.subr.mxu0 0.0
        %291 = vmatpush2.msra.mxu0 %v215
        %292 = vmatprep.subr.mxu0 0.0
        %293 = vmatpush2.msra.mxu0 %v214
        %294 = vmatprep.subr.mxu0 0.0
        %295 = vmatpush2.msra.mxu0 %v213
        %296 = vmatprep.mubr.f32.mxu0 %v230
        %297 = vmatmul.mubr.f32.gmra.mxu0 %v196
        %v298 = vpop.f32.mrf.mxu0
        %v299 = vadd.f32 0.0, %v298
        %v300 = vpop.f32.mrf.mxu0
        %301 = vdwg.mxu0
        %v302 = vmul.f32 %v299, 0.00390625
        %v303 = vld [vmem:[%s2] sm:$0x3]
        %vm304 = vcmask 31744
        %v306 = vsel %vm304, %v303, 0
        %vm308 = vcmask 1043456
        %v310 = vsel %vm308, %v302, 0
        %312 = vmatprep.subr.mxu0 0.0
        %313 = vmatpush1.msra.mxu0 0.0
        %314 = vmatprep.subr.mxu0 0.0
        %315 = vmatpush1.msra.mxu0 0.0
        %316 = vmatprep.subr.mxu0 0.0
        %317 = vmatpush1.msra.mxu0 0.0
        %318 = vmatprep.subr.mxu0 0.0
        %319 = vmatpush1.msra.mxu0 0.0
        %320 = vmatprep.subr.mxu0 0.0
        %321 = vmatpush1.msra.mxu0 0.0
        %322 = vmatprep.subr.mxu0 0.0
        %323 = vmatpush1.msra.mxu0 0.0
        %324 = vmatprep.subr.mxu0 0.0
        %325 = vmatpush1.msra.mxu0 0.0
        %326 = vmatprep.subr.mxu0 0.0
        %327 = vmatpush1.msra.mxu0 0.0
        %328 = vmatprep.subr.mxu0 0.0
        %329 = vmatpush1.msra.mxu0 0.0
        %330 = vmatprep.subr.mxu0 0.0
        %331 = vmatpush1.msra.mxu0 0.0
        %332 = vmatprep.subr.mxu0 0.0
        %333 = vmatpush1.msra.mxu0 0.0
        %334 = vmatprep.subr.mxu0 0.0
        %335 = vmatpush1.msra.mxu0 0.0
        %336 = vmatprep.subr.mxu0 0.0
        %337 = vmatpush1.msra.mxu0 0.0
        %338 = vmatprep.subr.mxu0 0.0
        %339 = vmatpush1.msra.mxu0 0.0
        %340 = vmatprep.subr.mxu0 0.0
        %341 = vmatpush1.msra.mxu0 0.0
        %342 = vmatprep.subr.mxu0 0.0
        %343 = vmatpush1.msra.mxu0 %v310
        %344 = vmatprep.subr.mxu0 0.0
        %345 = vmatpush2.msra.mxu0 0.0
        %346 = vmatprep.subr.mxu0 0.0
        %347 = vmatpush2.msra.mxu0 0.0
        %348 = vmatprep.subr.mxu0 0.0
        %349 = vmatpush2.msra.mxu0 0.0
        %350 = vmatprep.subr.mxu0 0.0
        %351 = vmatpush2.msra.mxu0 0.0
        %352 = vmatprep.subr.mxu0 0.0
        %353 = vmatpush2.msra.mxu0 0.0
        %354 = vmatprep.subr.mxu0 0.0
        %355 = vmatpush2.msra.mxu0 0.0
        %356 = vmatprep.subr.mxu0 0.0
        %357 = vmatpush2.msra.mxu0 0.0
        %358 = vmatprep.subr.mxu0 0.0
        %359 = vmatpush2.msra.mxu0 0.0
        %360 = vmatprep.subr.mxu0 0.0
        %361 = vmatpush2.msra.mxu0 0.0
        %362 = vmatprep.subr.mxu0 0.0
        %363 = vmatpush2.msra.mxu0 0.0
        %364 = vmatprep.subr.mxu0 0.0
        %365 = vmatpush2.msra.mxu0 0.0
        %366 = vmatprep.subr.mxu0 0.0
        %367 = vmatpush2.msra.mxu0 0.0
        %368 = vmatprep.subr.mxu0 0.0
        %369 = vmatpush2.msra.mxu0 0.0
        %370 = vmatprep.subr.mxu0 0.0
        %371 = vmatpush2.msra.mxu0 0.0
        %372 = vmatprep.subr.mxu0 0.0
        %373 = vmatpush2.msra.mxu0 0.0
        %374 = vmatprep.subr.mxu0 0.0
        %375 = vmatpush2.msra.mxu0 0.0
        %376 = vmatprep.mubr.f32.mxu0 0.0
        %377 = vmatmul.mubr.f32.gmra.mxu0 %v306
        %v378 = vpop.f32.mrf.mxu0
        %v379 = vadd.f32 0.0, %v378
        %v380 = vpop.f32.mrf.mxu0
        %381 = vdwg.mxu0
        %v382 = vxor.u32 %v379, 2147483648
        %v383 = vmul.f32 %v382, 1.442695
        %v384 = vpow.pop %v383
        %v385 = vadd.f32 %v384, 1.0
        %v386 = vrcp.pop %v385
        %v387 = vmul.f32 1.0, %v386
        %v388 = vmul.f32 %v379, %v387
        %v389 = vld [vmem:[%s3] sm:$0xf]
        %vm390 = vcmask 15360
        %v392 = vsel %vm390, %v389, 0
        %vm394 = vcmask 1041408
        %v396 = vsel %vm394, %v388, 0
        %398 = vmatprep.subr.mxu0 0.0
        %399 = vmatpush1.msra.mxu0 0.0
        %400 = vmatprep.subr.mxu0 0.0
        %401 = vmatpush1.msra.mxu0 0.0
        %402 = vmatprep.subr.mxu0 0.0
        %403 = vmatpush1.msra.mxu0 0.0
        %404 = vmatprep.subr.mxu0 0.0
        %405 = vmatpush1.msra.mxu0 0.0
        %406 = vmatprep.subr.mxu0 0.0
        %407 = vmatpush1.msra.mxu0 0.0
        %408 = vmatprep.subr.mxu0 0.0
        %409 = vmatpush1.msra.mxu0 0.0
        %410 = vmatprep.subr.mxu0 0.0
        %411 = vmatpush1.msra.mxu0 0.0
        %412 = vmatprep.subr.mxu0 0.0
        %413 = vmatpush1.msra.mxu0 0.0
        %414 = vmatprep.subr.mxu0 0.0
        %415 = vmatpush1.msra.mxu0 0.0
        %416 = vmatprep.subr.mxu0 0.0
        %417 = vmatpush1.msra.mxu0 0.0
        %418 = vmatprep.subr.mxu0 0.0
        %419 = vmatpush1.msra.mxu0 0.0
        %420 = vmatprep.subr.mxu0 0.0
        %421 = vmatpush1.msra.mxu0 0.0
        %422 = vmatprep.subr.mxu0 0.0
        %423 = vmatpush1.msra.mxu0 0.0
        %424 = vmatprep.subr.mxu0 0.0
        %425 = vmatpush1.msra.mxu0 0.0
        %426 = vmatprep.subr.mxu0 0.0
        %427 = vmatpush1.msra.mxu0 0.0
        %428 = vmatprep.subr.mxu0 0.0
        %429 = vmatpush1.msra.mxu0 %v396
        %430 = vmatprep.subr.mxu0 0.0
        %431 = vmatpush2.msra.mxu0 0.0
        %432 = vmatprep.subr.mxu0 0.0
        %433 = vmatpush2.msra.mxu0 0.0
        %434 = vmatprep.subr.mxu0 0.0
        %435 = vmatpush2.msra.mxu0 0.0
        %436 = vmatprep.subr.mxu0 0.0
        %437 = vmatpush2.msra.mxu0 0.0
        %438 = vmatprep.subr.mxu0 0.0
        %439 = vmatpush2.msra.mxu0 0.0
        %440 = vmatprep.subr.mxu0 0.0
        %441 = vmatpush2.msra.mxu0 0.0
        %442 = vmatprep.subr.mxu0 0.0
        %443 = vmatpush2.msra.mxu0 0.0
        %444 = vmatprep.subr.mxu0 0.0
        %445 = vmatpush2.msra.mxu0 0.0
        %446 = vmatprep.subr.mxu0 0.0
        %447 = vmatpush2.msra.mxu0 0.0
        %448 = vmatprep.subr.mxu0 0.0
        %449 = vmatpush2.msra.mxu0 0.0
        %450 = vmatprep.subr.mxu0 0.0
        %451 = vmatpush2.msra.mxu0 0.0
        %452 = vmatprep.subr.mxu0 0.0
        %453 = vmatpush2.msra.mxu0 0.0
        %454 = vmatprep.subr.mxu0 0.0
        %455 = vmatpush2.msra.mxu0 0.0
        %456 = vmatprep.subr.mxu0 0.0
        %457 = vmatpush2.msra.mxu0 0.0
        %458 = vmatprep.subr.mxu0 0.0
        %459 = vmatpush2.msra.mxu0 0.0
        %460 = vmatprep.subr.mxu0 0.0
        %461 = vmatpush2.msra.mxu0 0.0
        %462 = vmatprep.mubr.f32.mxu0 0.0
        %463 = vmatmul.mubr.f32.gmra.mxu0 %v392
        %v464 = vpop.f32.mrf.mxu0
        %v465 = vadd.f32 0.0, %v464
        %v466 = vpop.f32.mrf.mxu0
        %467 = vdwg.mxu0
        %v468 = vxor.u32 %v465, 2147483648
        %v469 = vmul.f32 %v468, 1.442695
        %v470 = vpow.pop %v469
        %v471 = vadd.f32 %v470, 1.0
        %v472 = vrcp.pop %v471
        %v473 = vmul.f32 1.0, %v472
        %475 = vset.pattern.permute.xlu0 0
        %476 = vperm.xlu0 %475, %v473
        %v477 = vpop.permute.xlu0 %476
        %v479 = vunpack.c.l.s4 839922192
        %v480 = vunpack.c.0.s8 %v479
        %v481 = vlaneseq
        %v482 = vshrl.u32 %v481, 7
        %v483 = vsub.s32 %v480, %v482
        %v484 = vrot.slane %v477, %v483
        %v486 = vmul.f32 %v196, %v484
        %487 = vst [vmem:[%s190] sm:$0xff] %v486
        %s488 = sand.u32 %s115, 1
        %s489 = scalar_lea.sflag [#allocation3], %s488
        %s490 = sand.u32 %s115, 1
        %s491 = smul.addr %s490, 8
        %s492 = scalar_lea.vmem [#allocation2], %s491
        // Predicated region
        $region37: #{tpu_custom_call.1} parent=35 // pred_check
          %p493 = pneg %p125
        $region38: #{tpu_custom_call.1} parent=35 // pred_check_branch
          %495 = sbr.rel (%p493) target = $region40
        $region39: #{tpu_custom_call.1} parent=35 // pred_region
          %s497 = ssub.s32 128, 128
          %498 = vsyncadd %s489, %s497
          %s499 = smul.addr %s18, 2
          %s500 = smul.addr %s499, 64
          %s501 = scalar_lea.hbm %s4, %s500
          %s503 = sshll.u32 %s492, 4
          %s504 = int_to_ptr.vmem [resolvable:$true] %s503
          %506 = dma.vmem_to_hbm [thread:$0]  %s504, 128, %s501, %s489
        $region40: #{tpu_custom_call.1} parent=35 // pred_fallthru
          _
      $region36: #{tpu_custom_call.1} parent=5 // pred_fallthru
        _
      %p507 = scmp.le.s32.totalorder 2, %s13
      // Predicated region
      $region41: #{tpu_custom_call.1} parent=5 // pred_check
        %p508 = pneg %p507
      $region42: #{tpu_custom_call.1} parent=5 // pred_check_branch
        %510 = sbr.rel (%p508) target = $region44
      $region43: #{tpu_custom_call.1} parent=5 // pred_region
        %s511 = ssub.s32 %s13, 2
        // Predicated region
        $region45: #{tpu_custom_call.1} parent=43 // pred_check
          %p512 = pneg %p131
        $region46: #{tpu_custom_call.1} parent=43 // pred_check_branch
          %514 = sbr.rel (%p512) target = $region48
        $region47: #{tpu_custom_call.1} parent=43 // pred_region
          %s515 = sand.u32 %s116, 1
          %s516 = scalar_lea.sflag [#allocation3], %s515
          %s517 = sand.u32 %s116, 1
          %s518 = smul.addr %s517, 8
          %s519 = scalar_lea.vmem [#allocation2], %s518
          %520 = dma.done %s516, 128
        $region48: #{tpu_custom_call.1} parent=43 // pred_fallthru
          _
      $region44: #{tpu_custom_call.1} parent=5 // pred_fallthru
        _
    $region6: #{tpu_custom_call.1} parent=1 // loop_footer
      %s17 = sadd.s32 1, %s13
    $region7: #{tpu_custom_call.1} parent=1 // loop_footer_branch
      %12 = sbr.rel target = $region3
    $region8: #{tpu_custom_call.1} parent=1 // loop_exit
      _
    %521 = vsyncpa [#allocation3], 1
    %s522 = scalar_lea.sflag [#allocation3], 1
    %523 = vsyncpa %s522, 1

</llo_original>
